<compile_context>
chip_gen: v7x
topology: tpu7x:2x2x1
jax: 0.10.0
libtpu: 0.0.40
codegen_flags: <defaults>
</compile_context>

<pallas_src>
import functools

import jax
import jax.numpy as jnp
from jax import lax
from jax.experimental import pallas as pl
from jax.experimental.pallas import tpu as pltpu

DILATIONS = (1, 2, 4)     # multi-scale 1-D conv dilations
KSIZE = 3                 # 1-D conv kernel size
LOCAL_MAX_THR = 0.1
EXCLUDE_BORDER_PX = 5
NUM_VECTOR_FIELDS = 3
PAD = max(DILATIONS) * (KSIZE // 2) + 1   # conv reach (4) + 1 for the 3x3 window
R0 = 8                                     # sublane-aligned top halo inside scratch


def _round_up(v, m):
    return ((v + m - 1) // m) * m


def _center_kernel(p_ref, s_ref, c_ref, o_ref, c_scr, s_scr, *, H, W, W_LANE, TB):
    """Processes TB batch elements per grid step.

    p_ref : SMEM (21,) f32   flat [wc (3x3) | ws (3x3) | bias (3)]
    s_ref : VMEM (TB, 1, H, W)   channel-0 field S (conv along H)
    c_ref : VMEM (TB, 1, H, W)   channel-1 field C (conv along W)
    o_ref : VMEM (TB, 1, H, W)   center heatmap output
    c_scr, s_scr : VMEM (HS, W_LANE) lane-dense zero-halo scratch tiles
    """
    n = len(DILATIONS)
    # Hoisted SMEM scalar reads (independent of the tb loop).
    wc = [[p_ref[si * KSIZE + k] for k in range(KSIZE)] for si in range(n)]
    ws = [[p_ref[n * KSIZE + si * KSIZE + k] for k in range(KSIZE)] for si in range(n)]
    bias_sum = p_ref[2 * n * KSIZE]
    for si in range(1, n):
        bias_sum = bias_sum + p_ref[2 * n * KSIZE + si]

    # Zero the halo scratches once per grid step; the image region is fully
    # overwritten for every batch element below, the halo stays zero.
    c_scr[...] = jnp.zeros_like(c_scr)
    s_scr[...] = jnp.zeros_like(s_scr)

    # Border-exclusion mask; it also kills the padded lanes >= W.
    eb = EXCLUDE_BORDER_PX
    row = lax.broadcasted_iota(jnp.int32, (H, W_LANE), 0)
    col = lax.broadcasted_iota(jnp.int32, (H, W_LANE), 1)
    inside = (row >= eb) & (row < H - eb) & (col >= eb) & (col < W - eb)

    for tb in range(TB):  # TB is static -> unrolled
        # Place the image inside the zero halo (lane-dense working layout).
        c_scr[R0:R0 + H, 0:W] = c_ref[tb, 0]
        s_scr[R0:R0 + H, 0:W] = s_ref[tb, 0]

        c_work = c_scr[R0:R0 + H, :]        # (H, W_LANE), aligned load
        s_cent = s_scr[R0:R0 + H, :]

        acc = jnp.full((H, W_LANE), bias_sum, jnp.float32)
        for si, d in enumerate(DILATIONS):
            # center taps
            acc = acc + wc[si][1] * c_work + ws[si][1] * s_cent
            # conv1d along W applied to C: lane shifts via XLU roll
            # (wraparound lands in zero-pad lanes for all unmasked pixels)
            acc = acc + wc[si][0] * pltpu.roll(c_work, d % W_LANE, axis=1)
            acc = acc + wc[si][2] * pltpu.roll(c_work, (-d) % W_LANE, axis=1)
            # conv1d along H applied to S: sublane slices into the zero halo
            acc = acc + ws[si][0] * s_scr[R0 - d:R0 - d + H, :]
            acc = acc + ws[si][2] * s_scr[R0 + d:R0 + d + H, :]

        heat = jax.nn.sigmoid(acc)          # (H, W_LANE)

        # Separable 3x3 local max.  Roll wraparound only corrupts the border
        # rows/cols, which the exclude-border (5 px) mask zeroes anyway.
        rmax = jnp.maximum(
            heat,
            jnp.maximum(pltpu.roll(heat, 1, axis=1),
                        pltpu.roll(heat, W_LANE - 1, axis=1)))
        nmax = jnp.maximum(
            rmax,
            jnp.maximum(pltpu.roll(rmax, 1, axis=0),
                        pltpu.roll(rmax, H - 1, axis=0)))

        keep = (heat >= nmax) & (heat > LOCAL_MAX_THR) & inside
        res = jnp.where(keep, heat, jnp.zeros_like(heat))
        o_ref[tb, 0] = res[:, 0:W]


def make_params():
    """Deterministic synthetic weights for the multiscale 1-D localization convs."""
    n = len(DILATIONS)
    base = jnp.arange(n * KSIZE, dtype=jnp.float32).reshape(n, KSIZE)
    wc = (base % 5.0 - 2.0) * 0.3          # conv weights applied to C (along W)
    ws = ((base + 1.0) % 5.0 - 2.0) * 0.3  # conv weights applied to S (along H)
    bias = jnp.linspace(-0.2, 0.2, n, dtype=jnp.float32)
    return wc, ws, bias


def _choose_batch_block(B, H, W):
    """Batch elements per grid step: amortize ~0.35us/step overhead on small maps,
    keep >=2 grid steps so both v7x TensorCores get work, cap the DMA block size."""
    for cand in (8, 4, 2):
        if B % cand == 0 and B // cand >= 2 and cand * H * W * 4 <= (4 << 20):
            return cand
    return 1


def center_estimator_fast_forward(x, params, num_vector_fields=NUM_VECTOR_FIELDS):
    """Mirrors CenterEstimatorFast.forward. x is NCHW float32."""
    assert x.shape[1] >= num_vector_fields
    wc, ws, bias = params
    B, _, H, W = x.shape

    # Flat SMEM parameter vector: [wc (9) | ws (9) | bias (3)].
    p_flat = jnp.concatenate(
        [wc.reshape(-1), ws.reshape(-1), bias.reshape(-1)]).astype(jnp.float32)

    TB = _choose_batch_block(B, H, W)
    HS = R0 + _round_up(H + PAD, 8)          # scratch rows (zero halo top/bottom)
    W_LANE = _round_up(W + PAD, 128)         # lane-dense scratch width

    kernel = functools.partial(_center_kernel, H=H, W=W, W_LANE=W_LANE, TB=TB)

    in_block = (TB, 1, H, W)
    vmem_need = (3 * 2 * TB * H * W * 4) + 2 * HS * W_LANE * 4
    vmem_limit = int(min(120 << 20, max(32 << 20, 4 * vmem_need)))

    xf = x.astype(jnp.float32)

    center_pred = pl.pallas_call(
        kernel,
        out_shape=jax.ShapeDtypeStruct((B, 1, H, W), jnp.float32),
        grid_spec=pltpu.PrefetchScalarGridSpec(
            num_scalar_prefetch=0,
            grid=(B // TB,),
            in_specs=[
                pl.BlockSpec(memory_space=pltpu.MemorySpace.SMEM),   # params
                pl.BlockSpec(in_block, lambda b: (b, 0, 0, 0)),      # S = channel 0
                pl.BlockSpec(in_block, lambda b: (b, 1, 0, 0)),      # C = channel 1
            ],
            out_specs=pl.BlockSpec((TB, 1, H, W), lambda b: (b, 0, 0, 0)),
            scratch_shapes=[
                pltpu.VMEM((HS, W_LANE), jnp.float32),   # C halo scratch
                pltpu.VMEM((HS, W_LANE), jnp.float32),   # S halo scratch
            ],
        ),
        compiler_params=pltpu.CompilerParams(
            dimension_semantics=("parallel",),
            vmem_limit_bytes=vmem_limit,
        ),
    )(p_flat, xf, xf)

    # TODO(synk): original module returns measured wall-clock timings; placeholder here.
    times = jnp.zeros((3,), jnp.float32)
    return center_pred, times


if __name__ == "__main__":
    key = jax.random.PRNGKey(0)
    B, Cch, H, W = 2, 4, 16, 16
    x = jax.random.normal(key, (B, Cch, H, W), dtype=jnp.float32)

    params = make_params()
    center_pred, times = center_estimator_fast_forward(x, params)
    jax.block_until_ready(center_pred)
    jax.block_until_ready(times)

    assert center_pred.shape == (B, 1, H, W)
    assert times.shape == (3,)
    print("KERNEL_OK")
</pallas_src>

<mosaic_0001>
module attributes {stable_mosaic.version = 11 : i64} {
  func.func @_center_kernel(%arg0: i32, %arg1: memref<21xf32, #tpu.memory_space<smem>>, %arg2: memref<1x1x16x16xf32, #tpu.memory_space<vmem>>, %arg3: memref<1x1x16x16xf32, #tpu.memory_space<vmem>>, %arg4: memref<1x1x16x16xf32, #tpu.memory_space<vmem>>, %arg5: memref<32x128xf32, #tpu.memory_space<vmem>>, %arg6: memref<32x128xf32, #tpu.memory_space<vmem>>) attributes {dimension_semantics = [#tpu.dimension_semantics<parallel>], iteration_bounds = array<i64: 2>, scalar_prefetch = 0 : i64, scratch_operands = 2 : i64, tpu.core_type = #tpu.core_type<tc>, window_params = [{transform_indices = @transform_0, window_bounds = array<i64: 21>}, {transform_indices = @transform_1, window_bounds = array<i64: 1, 1, 16, 16>}, {transform_indices = @transform_2, window_bounds = array<i64: 1, 1, 16, 16>}, {transform_indices = @transform_3, window_bounds = array<i64: 1, 1, 16, 16>}]} {
    %c0 = arith.constant 0 : index
    %0 = memref.load %arg1[%c0] : memref<21xf32, #tpu.memory_space<smem>>
    %c1 = arith.constant 1 : index
    %1 = memref.load %arg1[%c1] : memref<21xf32, #tpu.memory_space<smem>>
    %c2 = arith.constant 2 : index
    %2 = memref.load %arg1[%c2] : memref<21xf32, #tpu.memory_space<smem>>
    %c3 = arith.constant 3 : index
    %3 = memref.load %arg1[%c3] : memref<21xf32, #tpu.memory_space<smem>>
    %c4 = arith.constant 4 : index
    %4 = memref.load %arg1[%c4] : memref<21xf32, #tpu.memory_space<smem>>
    %c5 = arith.constant 5 : index
    %5 = memref.load %arg1[%c5] : memref<21xf32, #tpu.memory_space<smem>>
    %c6 = arith.constant 6 : index
    %6 = memref.load %arg1[%c6] : memref<21xf32, #tpu.memory_space<smem>>
    %c7 = arith.constant 7 : index
    %7 = memref.load %arg1[%c7] : memref<21xf32, #tpu.memory_space<smem>>
    %c8 = arith.constant 8 : index
    %8 = memref.load %arg1[%c8] : memref<21xf32, #tpu.memory_space<smem>>
    %c9 = arith.constant 9 : index
    %9 = memref.load %arg1[%c9] : memref<21xf32, #tpu.memory_space<smem>>
    %c10 = arith.constant 10 : index
    %10 = memref.load %arg1[%c10] : memref<21xf32, #tpu.memory_space<smem>>
    %c11 = arith.constant 11 : index
    %11 = memref.load %arg1[%c11] : memref<21xf32, #tpu.memory_space<smem>>
    %c12 = arith.constant 12 : index
    %12 = memref.load %arg1[%c12] : memref<21xf32, #tpu.memory_space<smem>>
    %c13 = arith.constant 13 : index
    %13 = memref.load %arg1[%c13] : memref<21xf32, #tpu.memory_space<smem>>
    %c14 = arith.constant 14 : index
    %14 = memref.load %arg1[%c14] : memref<21xf32, #tpu.memory_space<smem>>
    %c15 = arith.constant 15 : index
    %15 = memref.load %arg1[%c15] : memref<21xf32, #tpu.memory_space<smem>>
    %c16 = arith.constant 16 : index
    %16 = memref.load %arg1[%c16] : memref<21xf32, #tpu.memory_space<smem>>
    %c17 = arith.constant 17 : index
    %17 = memref.load %arg1[%c17] : memref<21xf32, #tpu.memory_space<smem>>
    %c18 = arith.constant 18 : index
    %18 = memref.load %arg1[%c18] : memref<21xf32, #tpu.memory_space<smem>>
    %c19 = arith.constant 19 : index
    %19 = memref.load %arg1[%c19] : memref<21xf32, #tpu.memory_space<smem>>
    %20 = arith.addf %18, %19 : f32
    %c20 = arith.constant 20 : index
    %21 = memref.load %arg1[%c20] : memref<21xf32, #tpu.memory_space<smem>>
    %22 = arith.addf %20, %21 : f32
    %cst = arith.constant 0.000000e+00 : f32
    %23 = vector.broadcast %cst : f32 to vector<32x128xf32>
    %c0_0 = arith.constant 0 : index
    %c0_1 = arith.constant 0 : index
    %24 = vector.load %arg5[%c0_0, %c0_1] : memref<32x128xf32, #tpu.memory_space<vmem>>, vector<32x128xf32>
    tpu.vector_store %arg5[%c0_0, %c0_1], %23 {strides = array<i32>} : memref<32x128xf32, #tpu.memory_space<vmem>>, vector<32x128xf32>,
    %cst_2 = arith.constant 0.000000e+00 : f32
    %25 = vector.broadcast %cst_2 : f32 to vector<32x128xf32>
    %c0_3 = arith.constant 0 : index
    %c0_4 = arith.constant 0 : index
    %26 = vector.load %arg6[%c0_3, %c0_4] : memref<32x128xf32, #tpu.memory_space<vmem>>, vector<32x128xf32>
    tpu.vector_store %arg6[%c0_3, %c0_4], %25 {strides = array<i32>} : memref<32x128xf32, #tpu.memory_space<vmem>>, vector<32x128xf32>,
    %27 = tpu.iota {dimensions = array<i32: 0>} : vector<16x128xi32>
    %28 = tpu.iota {dimensions = array<i32: 1>} : vector<16x128xi32>
    %c5_i32 = arith.constant 5 : i32
    %29 = vector.broadcast %c5_i32 : i32 to vector<16x128xi32>
    %30 = arith.cmpi sge, %27, %29 : vector<16x128xi32>
    %c11_i32 = arith.constant 11 : i32
    %31 = vector.broadcast %c11_i32 : i32 to vector<16x128xi32>
    %32 = arith.cmpi slt, %27, %31 : vector<16x128xi32>
    %33 = arith.andi %30, %32 : vector<16x128xi1>
    %c5_i32_5 = arith.constant 5 : i32
    %34 = vector.broadcast %c5_i32_5 : i32 to vector<16x128xi32>
    %35 = arith.cmpi sge, %28, %34 : vector<16x128xi32>
    %36 = arith.andi %33, %35 : vector<16x128xi1>
    %c11_i32_6 = arith.constant 11 : i32
    %37 = vector.broadcast %c11_i32_6 : i32 to vector<16x128xi32>
    %38 = arith.cmpi slt, %28, %37 : vector<16x128xi32>
    %39 = arith.andi %36, %38 : vector<16x128xi1>
    %c0_7 = arith.constant 0 : index
    %c0_8 = arith.constant 0 : index
    %c0_9 = arith.constant 0 : index
    %c0_10 = arith.constant 0 : index
    %40 = vector.load %arg3[%c0_7, %c0_8, %c0_9, %c0_10] : memref<1x1x16x16xf32, #tpu.memory_space<vmem>>, vector<1x1x16x16xf32>
    %41 = vector.shape_cast %40 : vector<1x1x16x16xf32> to vector<16x16xf32>
    %c8_11 = arith.constant 8 : index
    %c0_12 = arith.constant 0 : index
    %42 = vector.load %arg5[%c8_11, %c0_12] : memref<32x128xf32, #tpu.memory_space<vmem>>, vector<16x16xf32>
    tpu.vector_store %arg5[%c8_11, %c0_12], %41 {strides = array<i32>} : memref<32x128xf32, #tpu.memory_space<vmem>>, vector<16x16xf32>,
    %c0_13 = arith.constant 0 : index
    %c0_14 = arith.constant 0 : index
    %c0_15 = arith.constant 0 : index
    %c0_16 = arith.constant 0 : index
    %43 = vector.load %arg2[%c0_13, %c0_14, %c0_15, %c0_16] : memref<1x1x16x16xf32, #tpu.memory_space<vmem>>, vector<1x1x16x16xf32>
    %44 = vector.shape_cast %43 : vector<1x1x16x16xf32> to vector<16x16xf32>
    %c8_17 = arith.constant 8 : index
    %c0_18 = arith.constant 0 : index
    %45 = vector.load %arg6[%c8_17, %c0_18] : memref<32x128xf32, #tpu.memory_space<vmem>>, vector<16x16xf32>
    tpu.vector_store %arg6[%c8_17, %c0_18], %44 {strides = array<i32>} : memref<32x128xf32, #tpu.memory_space<vmem>>, vector<16x16xf32>,
    %c8_19 = arith.constant 8 : index
    %c0_20 = arith.constant 0 : index
    %46 = vector.load %arg5[%c8_19, %c0_20] : memref<32x128xf32, #tpu.memory_space<vmem>>, vector<16x128xf32>
    %c8_21 = arith.constant 8 : index
    %c0_22 = arith.constant 0 : index
    %47 = vector.load %arg6[%c8_21, %c0_22] : memref<32x128xf32, #tpu.memory_space<vmem>>, vector<16x128xf32>
    %48 = vector.broadcast %22 : f32 to vector<16x128xf32>
    %49 = vector.broadcast %1 : f32 to vector<16x128xf32>
    %50 = arith.mulf %49, %46 : vector<16x128xf32>
    %51 = arith.addf %48, %50 : vector<16x128xf32>
    %52 = vector.broadcast %10 : f32 to vector<16x128xf32>
    %53 = arith.mulf %52, %47 : vector<16x128xf32>
    %54 = arith.addf %51, %53 : vector<16x128xf32>
    %c1_i32 = arith.constant 1 : i32
    %55 = tpu.dynamic_rotate %46 by %c1_i32 dim 1 : vector<16x128xf32>, i32 -> vector<16x128xf32>
    %56 = vector.broadcast %0 : f32 to vector<16x128xf32>
    %57 = arith.mulf %56, %55 : vector<16x128xf32>
    %58 = arith.addf %54, %57 : vector<16x128xf32>
    %c127_i32 = arith.constant 127 : i32
    %59 = tpu.dynamic_rotate %46 by %c127_i32 dim 1 : vector<16x128xf32>, i32 -> vector<16x128xf32>
    %60 = vector.broadcast %2 : f32 to vector<16x128xf32>
    %61 = arith.mulf %60, %59 : vector<16x128xf32>
    %62 = arith.addf %58, %61 : vector<16x128xf32>
    %c7_23 = arith.constant 7 : index
    %c0_24 = arith.constant 0 : index
    %63 = vector.load %arg6[%c7_23, %c0_24] : memref<32x128xf32, #tpu.memory_space<vmem>>, vector<16x128xf32>
    %64 = vector.broadcast %9 : f32 to vector<16x128xf32>
    %65 = arith.mulf %64, %63 : vector<16x128xf32>
    %66 = arith.addf %62, %65 : vector<16x128xf32>
    %c9_25 = arith.constant 9 : index
    %c0_26 = arith.constant 0 : index
    %67 = vector.load %arg6[%c9_25, %c0_26] : memref<32x128xf32, #tpu.memory_space<vmem>>, vector<16x128xf32>
    %68 = vector.broadcast %11 : f32 to vector<16x128xf32>
    %69 = arith.mulf %68, %67 : vector<16x128xf32>
    %70 = arith.addf %66, %69 : vector<16x128xf32>
    %71 = vector.broadcast %4 : f32 to vector<16x128xf32>
    %72 = arith.mulf %71, %46 : vector<16x128xf32>
    %73 = arith.addf %70, %72 : vector<16x128xf32>
    %74 = vector.broadcast %13 : f32 to vector<16x128xf32>
    %75 = arith.mulf %74, %47 : vector<16x128xf32>
    %76 = arith.addf %73, %75 : vector<16x128xf32>
    %c2_i32 = arith.constant 2 : i32
    %77 = tpu.dynamic_rotate %46 by %c2_i32 dim 1 : vector<16x128xf32>, i32 -> vector<16x128xf32>
    %78 = vector.broadcast %3 : f32 to vector<16x128xf32>
    %79 = arith.mulf %78, %77 : vector<16x128xf32>
    %80 = arith.addf %76, %79 : vector<16x128xf32>
    %c126_i32 = arith.constant 126 : i32
    %81 = tpu.dynamic_rotate %46 by %c126_i32 dim 1 : vector<16x128xf32>, i32 -> vector<16x128xf32>
    %82 = vector.broadcast %5 : f32 to vector<16x128xf32>
    %83 = arith.mulf %82, %81 : vector<16x128xf32>
    %84 = arith.addf %80, %83 : vector<16x128xf32>
    %c6_27 = arith.constant 6 : index
    %c0_28 = arith.constant 0 : index
    %85 = vector.load %arg6[%c6_27, %c0_28] : memref<32x128xf32, #tpu.memory_space<vmem>>, vector<16x128xf32>
    %86 = vector.broadcast %12 : f32 to vector<16x128xf32>
    %87 = arith.mulf %86, %85 : vector<16x128xf32>
    %88 = arith.addf %84, %87 : vector<16x128xf32>
    %c10_29 = arith.constant 10 : index
    %c0_30 = arith.constant 0 : index
    %89 = vector.load %arg6[%c10_29, %c0_30] : memref<32x128xf32, #tpu.memory_space<vmem>>, vector<16x128xf32>
    %90 = vector.broadcast %14 : f32 to vector<16x128xf32>
    %91 = arith.mulf %90, %89 : vector<16x128xf32>
    %92 = arith.addf %88, %91 : vector<16x128xf32>
    %93 = vector.broadcast %7 : f32 to vector<16x128xf32>
    %94 = arith.mulf %93, %46 : vector<16x128xf32>
    %95 = arith.addf %92, %94 : vector<16x128xf32>
    %96 = vector.broadcast %16 : f32 to vector<16x128xf32>
    %97 = arith.mulf %96, %47 : vector<16x128xf32>
    %98 = arith.addf %95, %97 : vector<16x128xf32>
    %c4_i32 = arith.constant 4 : i32
    %99 = tpu.dynamic_rotate %46 by %c4_i32 dim 1 : vector<16x128xf32>, i32 -> vector<16x128xf32>
    %100 = vector.broadcast %6 : f32 to vector<16x128xf32>
    %101 = arith.mulf %100, %99 : vector<16x128xf32>
    %102 = arith.addf %98, %101 : vector<16x128xf32>
    %c124_i32 = arith.constant 124 : i32
    %103 = tpu.dynamic_rotate %46 by %c124_i32 dim 1 : vector<16x128xf32>, i32 -> vector<16x128xf32>
    %104 = vector.broadcast %8 : f32 to vector<16x128xf32>
    %105 = arith.mulf %104, %103 : vector<16x128xf32>
    %106 = arith.addf %102, %105 : vector<16x128xf32>
    %c4_31 = arith.constant 4 : index
    %c0_32 = arith.constant 0 : index
    %107 = vector.load %arg6[%c4_31, %c0_32] : memref<32x128xf32, #tpu.memory_space<vmem>>, vector<16x128xf32>
    %108 = vector.broadcast %15 : f32 to vector<16x128xf32>
    %109 = arith.mulf %108, %107 : vector<16x128xf32>
    %110 = arith.addf %106, %109 : vector<16x128xf32>
    %c12_33 = arith.constant 12 : index
    %c0_34 = arith.constant 0 : index
    %111 = vector.load %arg6[%c12_33, %c0_34] : memref<32x128xf32, #tpu.memory_space<vmem>>, vector<16x128xf32>
    %112 = vector.broadcast %17 : f32 to vector<16x128xf32>
    %113 = arith.mulf %112, %111 : vector<16x128xf32>
    %114 = arith.addf %110, %113 : vector<16x128xf32>
    %115 = arith.negf %114 : vector<16x128xf32>
    %116 = math.exp %115 : vector<16x128xf32>
    %cst_35 = arith.constant 1.000000e+00 : f32
    %117 = vector.broadcast %cst_35 : f32 to vector<16x128xf32>
    %118 = arith.addf %117, %116 : vector<16x128xf32>
    %119 = arith.divf %117, %118 : vector<16x128xf32>
    %c1_i32_36 = arith.constant 1 : i32
    %120 = tpu.dynamic_rotate %119 by %c1_i32_36 dim 1 : vector<16x128xf32>, i32 -> vector<16x128xf32>
    %c127_i32_37 = arith.constant 127 : i32
    %121 = tpu.dynamic_rotate %119 by %c127_i32_37 dim 1 : vector<16x128xf32>, i32 -> vector<16x128xf32>
    %122 = arith.maximumf %120, %121 : vector<16x128xf32>
    %123 = arith.maximumf %119, %122 : vector<16x128xf32>
    %c1_i32_38 = arith.constant 1 : i32
    %124 = tpu.dynamic_rotate %123 by %c1_i32_38 dim 0 : vector<16x128xf32>, i32 -> vector<16x128xf32>
    %c15_i32 = arith.constant 15 : i32
    %125 = tpu.dynamic_rotate %123 by %c15_i32 dim 0 : vector<16x128xf32>, i32 -> vector<16x128xf32>
    %126 = arith.maximumf %124, %125 : vector<16x128xf32>
    %127 = arith.maximumf %123, %126 : vector<16x128xf32>
    %128 = arith.cmpf oge, %119, %127 : vector<16x128xf32>
    %cst_39 = arith.constant 1.000000e-01 : f32
    %129 = vector.broadcast %cst_39 : f32 to vector<16x128xf32>
    %130 = arith.cmpf ogt, %119, %129 : vector<16x128xf32>
    %131 = arith.andi %128, %130 : vector<16x128xi1>
    %132 = arith.andi %131, %39 : vector<16x128xi1>
    %cst_40 = arith.constant 0.000000e+00 : f32
    %133 = vector.broadcast %cst_40 : f32 to vector<16x128xf32>
    %134 = arith.select %132, %119, %133 : vector<16x128xi1>, vector<16x128xf32>
    %135 = vector.extract_strided_slice %134 {offsets = [0, 0], sizes = [16, 16], strides = [1, 1]} : vector<16x128xf32> to vector<16x16xf32>
    %c0_41 = arith.constant 0 : index
    %c0_42 = arith.constant 0 : index
    %c0_43 = arith.constant 0 : index
    %c0_44 = arith.constant 0 : index
    %136 = vector.load %arg4[%c0_41, %c0_42, %c0_43, %c0_44] : memref<1x1x16x16xf32, #tpu.memory_space<vmem>>, vector<1x1x16x16xf32>
    %137 = vector.shape_cast %136 : vector<1x1x16x16xf32> to vector<16x16xf32>
    %138 = vector.shape_cast %135 : vector<16x16xf32> to vector<1x1x16x16xf32>
    tpu.vector_store %arg4[%c0_41, %c0_42, %c0_43, %c0_44], %138 {strides = array<i32>} : memref<1x1x16x16xf32, #tpu.memory_space<vmem>>, vector<1x1x16x16xf32>,
    return
  }
  func.func @transform_0(%arg0: i32) -> i32 {
    %c0_i32 = arith.constant 0 : i32
    %c0_i32_0 = arith.constant 0 : i32
    return %c0_i32 : i32
  }
  func.func @transform_1(%arg0: i32) -> (i32, i32, i32, i32) {
    %c0_i32 = arith.constant 0 : i32
    %c0_i32_0 = arith.constant 0 : i32
    %c0_i32_1 = arith.constant 0 : i32
    %c0_i32_2 = arith.constant 0 : i32
    return %arg0, %c0_i32, %c0_i32_0, %c0_i32_1 : i32, i32, i32, i32
  }
  func.func @transform_2(%arg0: i32) -> (i32, i32, i32, i32) {
    %c1_i32 = arith.constant 1 : i32
    %c0_i32 = arith.constant 0 : i32
    %c0_i32_0 = arith.constant 0 : i32
    %c0_i32_1 = arith.constant 0 : i32
    return %arg0, %c1_i32, %c0_i32, %c0_i32_0 : i32, i32, i32, i32
  }
  func.func @transform_3(%arg0: i32) -> (i32, i32, i32, i32) {
    %c0_i32 = arith.constant 0 : i32
    %c0_i32_0 = arith.constant 0 : i32
    %c0_i32_1 = arith.constant 0 : i32
    %c0_i32_2 = arith.constant 0 : i32
    return %arg0, %c0_i32, %c0_i32_0, %c0_i32_1 : i32, i32, i32, i32
  }
}

</mosaic_0001>

<llo_original>
// kernel: tpu_custom_call.1
$region0: #{tpu_custom_call.1}
  #allocation0 [shape = 'u32[]', space=smem, size = 0x4, offset = 0x4, fixed_abs, tag = 'smem constant byte address 0x4 - core index']
  #allocation1 [shape = 'u32[144,128]{1,0:T(1,128)}', space=vmem, size = 0x12000, scoped, tag = 'internal scratch']
  #allocation2 [shape = 'f32[32,128]{1,0:T(8,128)}', space=vmem, size = 0x4000, scoped, tag = 'scratch operand']
  #allocation3 [shape = 'f32[32,128]{1,0:T(8,128)}', space=vmem, size = 0x4000, scoped, tag = 'scratch operand']
  %s0 = inlined_call_operand.hbm [shape: f32[21], index: 0, kind: input, shape index: {}]
  %s1 = inlined_call_operand.hbm [shape: f32[2,4,16,16], index: 1, kind: input, shape index: {}]
  %s2 = inlined_call_operand.hbm [shape: f32[2,4,16,16], index: 2, kind: input, shape index: {}]
  %s3 = inlined_call_operand.hbm [shape: f32[2,1,16,16], index: 3, kind: output, shape index: {}]
  %s4 = sld [smem:[#allocation0]]
  $region57: #{tpu_custom_call.1} parent=0
    _
  %s6 = ssub.s32 1, %s4
  %s7 = scalar_select 0, %s6, %s4
  $region1: #{tpu_custom_call.1} parent=0
    #allocation4 [shape = 'u8[512]{0}', space=smem, size = 0x200, scoped, tag = 'input window, operand 0, single buffered']
    #allocation5 [shape = 's32[2]{0}', space=sflag, size = 0x8, scoped, tag = 'scoped memory for tpu_custom_call.1']
    #allocation6 [shape = 's32[2]{0}', space=sflag, size = 0x8, scoped, tag = 'scoped memory for tpu_custom_call.1']
    #allocation7 [shape = 's32[2]{0}', space=sflag, size = 0x8, scoped, tag = 'scoped memory for tpu_custom_call.1']
    #allocation8 [shape = 'u8[16384]{0}', space=vmem, size = 0x4000, scoped, tag = 'input window, operand 1']
    #allocation9 [shape = 'u8[16384]{0}', space=vmem, size = 0x4000, scoped, tag = 'input window, operand 2']
    #allocation10 [shape = 's32[2]{0}', space=sflag, size = 0x8, scoped, tag = 'scoped memory for tpu_custom_call.1']
    #allocation11 [shape = 'u8[16384]{0}', space=vmem, size = 0x4000, scoped, tag = 'output window, operand 0']
    %8 = vsyncpa [#allocation7], 0
    %9 = vsyncpa [#allocation5], 0
    %s10 = scalar_lea.sflag [#allocation5], 1
    %11 = vsyncpa %s10, 0
    %12 = vsyncpa [#allocation10], 0
    %s13 = scalar_lea.sflag [#allocation10], 1
    %14 = vsyncpa %s13, 0
    %15 = vsyncpa [#allocation6], 0
    %s16 = scalar_lea.sflag [#allocation6], 1
    %17 = vsyncpa %s16, 0
    loop: start=0, step=1, limit=4
    $region2: #{tpu_custom_call.1} parent=1 // loop_pre_header
      _
    $region3: #{tpu_custom_call.1} parent=1 // loop_header
      %s19 = sphi 0, %s23
      %p20 = scmp.ge.s32.totalorder %s19, 4
      %s27 = sphi 0, %s27
      %s29 = sphi 0, %s27
      %s30 = sphi 0, %s29
      %s44 = sphi 0, %s30
      %s50 = sphi 0, %s52
      %s53 = sphi 0, %s50
      %s54 = sphi 0, %s53
      %s70 = sphi 0, %s54
      %s76 = sphi 0, %s78
      %s79 = sphi 0, %s76
      %s80 = sphi 0, %s79
      %s96 = sphi 0, %s80
      %s102 = sphi 0, %s104
      %s105 = sphi 0, %s102
      %s106 = sphi 0, %s105
      %s122 = sphi 0, %s106
    $region4: #{tpu_custom_call.1} parent=1 // loop_header_branch
      %22 = sbr.rel (%p20) target = $region8
    $region5: #{tpu_custom_call.1} parent=1 // loop_body
      %s24 = ssub.s32 %s19, 1
      %s25 = ssub.s32 %s19, 2
      %s26 = sadd.s32 %s19, 1
      %s28 = sadd.s32 %s27, 1
      %p31 = scmp.eq.s32.totalorder %s19, 1
      %p32 = scmp.ne.s32.totalorder %s27, %s29
      %p33 = scmp.eq.s32.totalorder %s19, 0
      %p34 = por %p32, %p33
      %p35 = scmp.ne.s32.totalorder %s27, %s29
      %p36 = scmp.eq.s32.totalorder %s24, 1
      %p37 = por %p35, %p36
      %p38 = scmp.ne.s32.totalorder %s29, %s30
      %p39 = scmp.eq.s32.totalorder %s24, 0
      %p40 = por %p38, %p39
      %p41 = scmp.ne.s32.totalorder %s29, %s30
      %p42 = scmp.eq.s32.totalorder %s25, 1
      %p43 = por %p41, %p42
      %p45 = scmp.ne.s32.totalorder %s30, %s44
      %p46 = scmp.eq.s32.totalorder %s25, 0
      %p47 = por %p45, %p46
      %s48 = ssub.s32 %s19, %s26
      %p49 = scmp.eq.s32.totalorder %s48, 0
      %s51 = sadd.s32 %s50, 1
      %s52 = scalar_select %p49, %s50, %s51
      %p55 = pneg %p49
      %p56 = scmp.eq.s32.totalorder %s19, 1
      %p57 = por %p55, %p56
      %p58 = scmp.ne.s32.totalorder %s50, %s53
      %p59 = scmp.eq.s32.totalorder %s19, 0
      %p60 = por %p58, %p59
      %p61 = scmp.ne.s32.totalorder %s50, %s53
      %p62 = scmp.eq.s32.totalorder %s24, 1
      %p63 = por %p61, %p62
      %p64 = scmp.ne.s32.totalorder %s53, %s54
      %p65 = scmp.eq.s32.totalorder %s24, 0
      %p66 = por %p64, %p65
      %p67 = scmp.ne.s32.totalorder %s53, %s54
      %p68 = scmp.eq.s32.totalorder %s25, 1
      %p69 = por %p67, %p68
      %p71 = scmp.ne.s32.totalorder %s54, %s70
      %p72 = scmp.eq.s32.totalorder %s25, 0
      %p73 = por %p71, %p72
      %s74 = ssub.s32 %s19, %s26
      %p75 = scmp.eq.s32.totalorder %s74, 0
      %s77 = sadd.s32 %s76, 1
      %s78 = scalar_select %p75, %s76, %s77
      %p81 = pneg %p75
      %p82 = scmp.eq.s32.totalorder %s19, 1
      %p83 = por %p81, %p82
      %p84 = scmp.ne.s32.totalorder %s76, %s79
      %p85 = scmp.eq.s32.totalorder %s19, 0
      %p86 = por %p84, %p85
      %p87 = scmp.ne.s32.totalorder %s76, %s79
      %p88 = scmp.eq.s32.totalorder %s24, 1
      %p89 = por %p87, %p88
      %p90 = scmp.ne.s32.totalorder %s79, %s80
      %p91 = scmp.eq.s32.totalorder %s24, 0
      %p92 = por %p90, %p91
      %p93 = scmp.ne.s32.totalorder %s79, %s80
      %p94 = scmp.eq.s32.totalorder %s25, 1
      %p95 = por %p93, %p94
      %p97 = scmp.ne.s32.totalorder %s80, %s96
      %p98 = scmp.eq.s32.totalorder %s25, 0
      %p99 = por %p97, %p98
      %s100 = ssub.s32 %s19, %s26
      %p101 = scmp.eq.s32.totalorder %s100, 0
      %s103 = sadd.s32 %s102, 1
      %s104 = scalar_select %p101, %s102, %s103
      %p107 = pneg %p101
      %p108 = scmp.eq.s32.totalorder %s19, 1
      %p109 = por %p107, %p108
      %p110 = scmp.ne.s32.totalorder %s102, %s105
      %p111 = scmp.eq.s32.totalorder %s19, 0
      %p112 = por %p110, %p111
      %p113 = scmp.ne.s32.totalorder %s102, %s105
      %p114 = scmp.eq.s32.totalorder %s24, 1
      %p115 = por %p113, %p114
      %p116 = scmp.ne.s32.totalorder %s105, %s106
      %p117 = scmp.eq.s32.totalorder %s24, 0
      %p118 = por %p116, %p117
      %p119 = scmp.ne.s32.totalorder %s105, %s106
      %p120 = scmp.eq.s32.totalorder %s25, 1
      %p121 = por %p119, %p120
      %p123 = scmp.ne.s32.totalorder %s106, %s122
      %p124 = scmp.eq.s32.totalorder %s25, 0
      %p125 = por %p123, %p124
      %p126 = scmp.le.s32.totalorder 1, %s19
      %p127 = scmp.lt.s32.totalorder %s19, 3
      %p128 = pnand %p126, %p127
      %p129 = pneg %p128
      // Predicated region
      $region9: #{tpu_custom_call.1} parent=5 // pred_check
        _
      $region10: #{tpu_custom_call.1} parent=5 // pred_check_branch
        %131 = sbr.rel (%p128) target = $region12
      $region11: #{tpu_custom_call.1} parent=5 // pred_region
        %s132 = ssub.s32 %s19, 1
        // Predicated region
        $region13: #{tpu_custom_call.1} parent=11 // pred_check
          %p133 = pneg %p40
        $region14: #{tpu_custom_call.1} parent=11 // pred_check_branch
          %135 = sbr.rel (%p133) target = $region16
        $region15: #{tpu_custom_call.1} parent=11 // pred_region
          %s137 = ssub.s32 16, 16
          %138 = vsyncadd [#allocation7], %s137
          %141 = dma.hbm_to_smem %s0, 16, [#allocation4], [#allocation7]
        $region16: #{tpu_custom_call.1} parent=11 // pred_fallthru
          _
      $region12: #{tpu_custom_call.1} parent=5 // pred_fallthru
        _
      %p142 = scmp.lt.s32.totalorder %s19, 2
      // Predicated region
      $region17: #{tpu_custom_call.1} parent=5 // pred_check
        %p143 = pneg %p142
      $region18: #{tpu_custom_call.1} parent=5 // pred_check_branch
        %145 = sbr.rel (%p143) target = $region20
      $region19: #{tpu_custom_call.1} parent=5 // pred_region
        // Predicated region
        $region21: #{tpu_custom_call.1} parent=19 // pred_check
          %p146 = pneg %p60
        $region22: #{tpu_custom_call.1} parent=19 // pred_check_branch
          %148 = sbr.rel (%p146) target = $region24
        $region23: #{tpu_custom_call.1} parent=19 // pred_region
          %s149 = sand.u32 %s50, 1
          %s150 = scalar_lea.sflag [#allocation5], %s149
          %s151 = sand.u32 %s50, 1
          %s152 = smul.addr %s151, 16
          %s153 = scalar_lea.vmem [#allocation8], %s152
          %s155 = ssub.s32 256, 256
          %156 = vsyncadd %s150, %s155
          %s157 = smul.addr %s19, 8
          %s158 = smul.addr %s157, 128
          %s159 = scalar_lea.hbm %s1, %s158
          %s160 = sshll.u32 %s153, 4
          %s161 = int_to_ptr.vmem [resolvable:$true] %s160
          %166 = dma.hbm_to_vmem [thread:$0]  %s159, 256, %s161, %s150, 128, 128, 8
        $region24: #{tpu_custom_call.1} parent=19 // pred_fallthru
          _
        // Predicated region
        $region25: #{tpu_custom_call.1} parent=19 // pred_check
          %p167 = pneg %p86
        $region26: #{tpu_custom_call.1} parent=19 // pred_check_branch
          %169 = sbr.rel (%p167) target = $region28
        $region27: #{tpu_custom_call.1} parent=19 // pred_region
          %s170 = sand.u32 %s76, 1
          %s171 = scalar_lea.sflag [#allocation10], %s170
          %s172 = sand.u32 %s76, 1
          %s173 = smul.addr %s172, 16
          %s174 = scalar_lea.vmem [#allocation9], %s173
          %s176 = ssub.s32 256, 256
          %177 = vsyncadd %s171, %s176
          %s178 = smul.addr %s19, 8
          %s179 = sadd.s32 2, %s178
          %s180 = smul.addr %s179, 128
          %s181 = scalar_lea.hbm %s2, %s180
          %s182 = sshll.u32 %s174, 4
          %s183 = int_to_ptr.vmem [resolvable:$true] %s182
          %188 = dma.hbm_to_vmem [thread:$0]  %s181, 256, %s183, %s171, 128, 128, 8
        $region28: #{tpu_custom_call.1} parent=19 // pred_fallthru
          _
      $region20: #{tpu_custom_call.1} parent=5 // pred_fallthru
        _
      %p189 = scmp.le.s32.totalorder 1, %s19
      %p190 = scmp.lt.s32.totalorder %s19, 3
      %p191 = pnand %p189, %p190
      %p192 = pneg %p191
      // Predicated region
      $region29: #{tpu_custom_call.1} parent=5 // pred_check
        _
      $region30: #{tpu_custom_call.1} parent=5 // pred_check_branch
        %194 = sbr.rel (%p191) target = $region32
      $region31: #{tpu_custom_call.1} parent=5 // pred_region
        %s195 = ssub.s32 %s19, 1
        // Predicated region
        $region33: #{tpu_custom_call.1} parent=31 // pred_check
          %p196 = pneg %p40
        $region34: #{tpu_custom_call.1} parent=31 // pred_check_branch
          %198 = sbr.rel (%p196) target = $region36
        $region35: #{tpu_custom_call.1} parent=31 // pred_region
          %199 = dma.done [#allocation7], 16
        $region36: #{tpu_custom_call.1} parent=31 // pred_fallthru
          _
        %s200 = sand.u32 %s53, 1
        %s201 = scalar_lea.sflag [#allocation5], %s200
        %s202 = sand.u32 %s53, 1
        %s203 = smul.addr %s202, 16
        %s204 = scalar_lea.vmem [#allocation8], %s203
        // Predicated region
        $region37: #{tpu_custom_call.1} parent=31 // pred_check
          %p205 = pneg %p66
        $region38: #{tpu_custom_call.1} parent=31 // pred_check_branch
          %207 = sbr.rel (%p205) target = $region40
        $region39: #{tpu_custom_call.1} parent=31 // pred_region
          %208 = dma.done %s201, 256
        $region40: #{tpu_custom_call.1} parent=31 // pred_fallthru
          _
        %s209 = sand.u32 %s79, 1
        %s210 = scalar_lea.sflag [#allocation10], %s209
        %s211 = sand.u32 %s79, 1
        %s212 = smul.addr %s211, 16
        %s213 = scalar_lea.vmem [#allocation9], %s212
        // Predicated region
        $region41: #{tpu_custom_call.1} parent=31 // pred_check
          %p214 = pneg %p92
        $region42: #{tpu_custom_call.1} parent=31 // pred_check_branch
          %216 = sbr.rel (%p214) target = $region44
        $region43: #{tpu_custom_call.1} parent=31 // pred_region
          %217 = dma.done %s210, 256
        $region44: #{tpu_custom_call.1} parent=31 // pred_fallthru
          _
        %218 = sfence
        %p219 = pneg %p40
        %p220 = pneg %p37
        %s221 = sand.u32 %s53, 1
        %s222 = scalar_lea.sflag [#allocation5], %s221
        %s223 = sand.u32 %s53, 1
        %s224 = smul.addr %s223, 16
        %s225 = scalar_lea.vmem [#allocation8], %s224
        %p226 = pneg %p66
        %p227 = pneg %p63
        %s228 = sand.u32 %s79, 1
        %s229 = scalar_lea.sflag [#allocation10], %s228
        %s230 = sand.u32 %s79, 1
        %s231 = smul.addr %s230, 16
        %s232 = scalar_lea.vmem [#allocation9], %s231
        %p233 = pneg %p92
        %p234 = pneg %p89
        %p235 = pneg %p118
        %p236 = pneg %p115
        %s237 = sand.u32 %s105, 1
        %s238 = scalar_lea.sflag [#allocation6], %s237
        %s239 = sand.u32 %s105, 1
        %s240 = smul.addr %s239, 16
        %s241 = scalar_lea.vmem [#allocation11], %s240
        %s242 = sld [smem:[#allocation4]]
        %s243 = sld [smem:[#allocation4 + $0x1]]
        %s244 = sld [smem:[#allocation4 + $0x2]]
        %s245 = sld [smem:[#allocation4 + $0x3]]
        %s246 = sld [smem:[#allocation4 + $0x4]]
        %s247 = sld [smem:[#allocation4 + $0x5]]
        %s248 = sld [smem:[#allocation4 + $0x6]]
        %s249 = sld [smem:[#allocation4 + $0x7]]
        %s250 = sld [smem:[#allocation4 + $0x8]]
        %s251 = sld [smem:[#allocation4 + $0x9]]
        %s252 = sld [smem:[#allocation4 + $0xa]]
        %s253 = sld [smem:[#allocation4 + $0xb]]
        %s254 = sld [smem:[#allocation4 + $0xc]]
        %s255 = sld [smem:[#allocation4 + $0xd]]
        %s256 = sld [smem:[#allocation4 + $0xe]]
        %s257 = sld [smem:[#allocation4 + $0xf]]
        %s258 = sld [smem:[#allocation4 + $0x10]]
        %s259 = sld [smem:[#allocation4 + $0x11]]
        %s260 = sld [smem:[#allocation4 + $0x12]]
        %s261 = sld [smem:[#allocation4 + $0x13]]
        %s262 = sadd.f32 %s260, %s261
        %s263 = sld [smem:[#allocation4 + $0x14]]
        %s264 = sadd.f32 %s262, %s263
        %265 = vst [vmem:[#allocation2] sm:$0xff] 0.0
        %266 = vst [vmem:[#allocation2 + $0x8] sm:$0xff] 0.0
        %267 = vst [vmem:[#allocation2 + $0x10] sm:$0xff] 0.0
        %268 = vst [vmem:[#allocation2 + $0x18] sm:$0xff] 0.0
        %269 = vst [vmem:[#allocation3] sm:$0xff] 0.0
        %270 = vst [vmem:[#allocation3 + $0x8] sm:$0xff] 0.0
        %271 = vst [vmem:[#allocation3 + $0x10] sm:$0xff] 0.0
        %272 = vst [vmem:[#allocation3 + $0x18] sm:$0xff] 0.0
        %v273 = vlaneseq
        %v274 = vshrl.u32 %v273, 7
        %v275 = vadd.s32 %v274, 8
        %v276 = vlaneseq
        %v277 = vand.u32 %v276, 127
        %vm278 = vcmp.ge.s32.totalorder %v274, 5
        %vm279 = vcmp.ge.s32.totalorder %v275, 5
        %vm280 = vcmp.lt.s32.totalorder %v274, 11
        %vm281 = vcmp.lt.s32.totalorder %v275, 11
        %vm282 = vmand %vm278, %vm280
        %vm283 = vmand %vm279, %vm281
        %vm284 = vcmp.ge.s32.totalorder %v277, 5
        %vm285 = vmand %vm282, %vm284
        %vm286 = vmand %vm283, %vm284
        %vm287 = vcmp.lt.s32.totalorder %v277, 11
        %vm288 = vmand %vm285, %vm287
        %vm289 = vmand %vm286, %vm287
        %v290 = vld [vmem:[%s213] sm:$0xff]
        %v291 = vld [vmem:[%s213 + $0x8] sm:$0xff]
        %vm292 = vcmask 130048
        %293 = vst.msk [vmem:[#allocation2 + $0x8] sm:$0xff] %vm292, %v290
        %294 = vst.msk [vmem:[#allocation2 + $0x10] sm:$0xff] %vm292, %v291
        %v295 = vld [vmem:[%s204] sm:$0xff]
        %v296 = vld [vmem:[%s204 + $0x8] sm:$0xff]
        %297 = vst.msk [vmem:[#allocation3 + $0x8] sm:$0xff] %vm292, %v295
        %298 = vst.msk [vmem:[#allocation3 + $0x10] sm:$0xff] %vm292, %v296
        %v299 = vld [vmem:[#allocation2 + $0x8] sm:$0xff]
        %v300 = vld [vmem:[#allocation2 + $0x10] sm:$0xff]
        %v301 = vld [vmem:[#allocation3 + $0x8] sm:$0xff]
        %v302 = vld [vmem:[#allocation3 + $0x10] sm:$0xff]
        %v303 = vstv %s264
        %v304 = vstv %s243
        %v305 = vmul.f32 %v304, %v299
        %v306 = vmul.f32 %v304, %v300
        %v307 = vadd.f32 %v303, %v305
        %v308 = vadd.f32 %v303, %v306
        %v309 = vstv %s252
        %v310 = vmul.f32 %v309, %v301
        %v311 = vmul.f32 %v309, %v302
        %v312 = vadd.f32 %v307, %v310
        %v313 = vadd.f32 %v308, %v311
        %314 = vrot.lane.b32.xlu0 %v299, 1
        %v315 = vpop.permute.xlu0 %314
        %316 = vrot.lane.b32.xlu0 %v300, 1
        %v317 = vpop.permute.xlu0 %316
        %v318 = vstv %s242
        %v319 = vmul.f32 %v318, %v315
        %v320 = vmul.f32 %v318, %v317
        %v321 = vadd.f32 %v312, %v319
        %v322 = vadd.f32 %v313, %v320
        %323 = vrot.lane.b32.xlu0 %v299, 127
        %v324 = vpop.permute.xlu0 %323
        %325 = vrot.lane.b32.xlu0 %v300, 127
        %v326 = vpop.permute.xlu0 %325
        %v327 = vstv %s244
        %v328 = vmul.f32 %v327, %v324
        %v329 = vmul.f32 %v327, %v326
        %v330 = vadd.f32 %v321, %v328
        %v331 = vadd.f32 %v322, %v329
        %v332 = vld [vmem:[#allocation3 + $0x7] sm:$0xff]
        %v333 = vld [vmem:[#allocation3 + $0xf] sm:$0xff]
        %v334 = vstv %s251
        %v335 = vmul.f32 %v334, %v332
        %v336 = vmul.f32 %v334, %v333
        %v337 = vadd.f32 %v330, %v335
        %v338 = vadd.f32 %v331, %v336
        %v339 = vld [vmem:[#allocation3 + $0x9] sm:$0xff]
        %v340 = vld [vmem:[#allocation3 + $0x11] sm:$0xff]
        %v341 = vstv %s253
        %v342 = vmul.f32 %v341, %v339
        %v343 = vmul.f32 %v341, %v340
        %v344 = vadd.f32 %v337, %v342
        %v345 = vadd.f32 %v338, %v343
        %v346 = vstv %s246
        %v347 = vmul.f32 %v346, %v299
        %v348 = vmul.f32 %v346, %v300
        %v349 = vadd.f32 %v344, %v347
        %v350 = vadd.f32 %v345, %v348
        %v351 = vstv %s255
        %v352 = vmul.f32 %v351, %v301
        %v353 = vmul.f32 %v351, %v302
        %v354 = vadd.f32 %v349, %v352
        %v355 = vadd.f32 %v350, %v353
        %356 = vrot.lane.b32.xlu0 %v299, 2
        %v357 = vpop.permute.xlu0 %356
        %358 = vrot.lane.b32.xlu0 %v300, 2
        %v359 = vpop.permute.xlu0 %358
        %v360 = vstv %s245
        %v361 = vmul.f32 %v360, %v357
        %v362 = vmul.f32 %v360, %v359
        %v363 = vadd.f32 %v354, %v361
        %v364 = vadd.f32 %v355, %v362
        %365 = vrot.lane.b32.xlu0 %v299, 126
        %v366 = vpop.permute.xlu0 %365
        %367 = vrot.lane.b32.xlu0 %v300, 126
        %v368 = vpop.permute.xlu0 %367
        %v369 = vstv %s247
        %v370 = vmul.f32 %v369, %v366
        %v371 = vmul.f32 %v369, %v368
        %v372 = vadd.f32 %v363, %v370
        %v373 = vadd.f32 %v364, %v371
        %v374 = vld [vmem:[#allocation3 + $0x6] sm:$0xff]
        %v375 = vld [vmem:[#allocation3 + $0xe] sm:$0xff]
        %v376 = vstv %s254
        %v377 = vmul.f32 %v376, %v374
        %v378 = vmul.f32 %v376, %v375
        %v379 = vadd.f32 %v372, %v377
        %v380 = vadd.f32 %v373, %v378
        %v381 = vld [vmem:[#allocation3 + $0xa] sm:$0xff]
        %v382 = vld [vmem:[#allocation3 + $0x12] sm:$0xff]
        %v383 = vstv %s256
        %v384 = vmul.f32 %v383, %v381
        %v385 = vmul.f32 %v383, %v382
        %v386 = vadd.f32 %v379, %v384
        %v387 = vadd.f32 %v380, %v385
        %v388 = vstv %s249
        %v389 = vmul.f32 %v388, %v299
        %v390 = vmul.f32 %v388, %v300
        %v391 = vadd.f32 %v386, %v389
        %v392 = vadd.f32 %v387, %v390
        %v393 = vstv %s258
        %v394 = vmul.f32 %v393, %v301
        %v395 = vmul.f32 %v393, %v302
        %v396 = vadd.f32 %v391, %v394
        %v397 = vadd.f32 %v392, %v395
        %398 = vrot.lane.b32.xlu0 %v299, 4
        %v399 = vpop.permute.xlu0 %398
        %400 = vrot.lane.b32.xlu0 %v300, 4
        %v401 = vpop.permute.xlu0 %400
        %v402 = vstv %s248
        %v403 = vmul.f32 %v402, %v399
        %v404 = vmul.f32 %v402, %v401
        %v405 = vadd.f32 %v396, %v403
        %v406 = vadd.f32 %v397, %v404
        %407 = vrot.lane.b32.xlu0 %v299, 124
        %v408 = vpop.permute.xlu0 %407
        %409 = vrot.lane.b32.xlu0 %v300, 124
        %v410 = vpop.permute.xlu0 %409
        %v411 = vstv %s250
        %v412 = vmul.f32 %v411, %v408
        %v413 = vmul.f32 %v411, %v410
        %v414 = vadd.f32 %v405, %v412
        %v415 = vadd.f32 %v406, %v413
        %v416 = vld [vmem:[#allocation3 + $0x4] sm:$0xff]
        %v417 = vld [vmem:[#allocation3 + $0xc] sm:$0xff]
        %v418 = vstv %s257
        %v419 = vmul.f32 %v418, %v416
        %v420 = vmul.f32 %v418, %v417
        %v421 = vadd.f32 %v414, %v419
        %v422 = vadd.f32 %v415, %v420
        %v423 = vld [vmem:[#allocation3 + $0x14] sm:$0xff]
        %v424 = vstv %s259
        %v425 = vmul.f32 %v424, %v417
        %v426 = vmul.f32 %v424, %v423
        %v427 = vadd.f32 %v421, %v425
        %v428 = vadd.f32 %v422, %v426
        %v429 = vxor.u32 %v427, 2147483648
        %v430 = vxor.u32 %v428, 2147483648
        %v431 = vmul.f32 %v429, 1.442695
        %v432 = vpow.pop %v431
        %v433 = vmul.f32 %v430, 1.442695
        %v434 = vpow.pop %v433
        %v435 = vadd.f32 %v432, 1.0
        %v436 = vadd.f32 %v434, 1.0
        %v437 = vrcp.pop %v435
        %v438 = vmul.f32 1.0, %v437
        %v439 = vrcp.pop %v436
        %v440 = vmul.f32 1.0, %v439
        %441 = vrot.lane.b32.xlu0 %v438, 1
        %v442 = vpop.permute.xlu0 %441
        %443 = vrot.lane.b32.xlu0 %v440, 1
        %v444 = vpop.permute.xlu0 %443
        %445 = vrot.lane.b32.xlu0 %v438, 127
        %v446 = vpop.permute.xlu0 %445
        %447 = vrot.lane.b32.xlu0 %v440, 127
        %v448 = vpop.permute.xlu0 %447
        %v449 = vmax.f32 %v442, %v446
        %v450 = vmax.f32 %v444, %v448
        %v451 = vmax.f32 %v438, %v449
        %v452 = vmax.f32 %v440, %v450
        %v453 = vrot.slane %v451, 7
        %v454 = vrot.slane %v452, 7
        %vm455 = vcmp.lt.s32.totalorder %v274, 1
        %v456 = vsel %vm455, %v453, %v454
        %v457 = vsel %vm455, %v454, %v453
        %v458 = vrot.slane %v451, 1
        %v459 = vrot.slane %v452, 1
        %vm460 = vcmp.lt.s32.totalorder %v274, 7
        %v461 = vsel %vm460, %v458, %v459
        %v462 = vsel %vm460, %v459, %v458
        %v463 = vmax.f32 %v457, %v461
        %v464 = vmax.f32 %v456, %v462
        %v465 = vmax.f32 %v451, %v463
        %v466 = vmax.f32 %v452, %v464
        %vm467 = vcmp.ge.f32.partialorder %v438, %v465
        %vm468 = vcmp.ge.f32.partialorder %v440, %v466
        %vm469 = vcmp.gt.f32.partialorder %v438, 0.1
        %vm470 = vcmp.gt.f32.partialorder %v440, 0.1
        %vm471 = vmand %vm467, %vm469
        %vm472 = vmand %vm468, %vm470
        %vm473 = vmand %vm471, %vm288
        %vm474 = vmand %vm472, %vm289
        %v475 = vsel %vm473, %v438, 0.0
        %v476 = vsel %vm474, %v440, 0.0
        %477 = vst.msk [vmem:[%s241] sm:$0xff] %vm292, %v475
        %478 = vst.msk [vmem:[%s241 + $0x8] sm:$0xff] %vm292, %v476
        %s479 = sand.u32 %s105, 1
        %s480 = scalar_lea.sflag [#allocation6], %s479
        %s481 = sand.u32 %s105, 1
        %s482 = smul.addr %s481, 16
        %s483 = scalar_lea.vmem [#allocation11], %s482
        // Predicated region
        $region45: #{tpu_custom_call.1} parent=31 // pred_check
          %p484 = pneg %p115
        $region46: #{tpu_custom_call.1} parent=31 // pred_check_branch
          %486 = sbr.rel (%p484) target = $region48
        $region47: #{tpu_custom_call.1} parent=31 // pred_region
          %s488 = ssub.s32 256, 256
          %489 = vsyncadd %s480, %s488
          %s490 = smul.addr %s24, 2
          %s491 = smul.addr %s490, 128
          %s492 = scalar_lea.hbm %s3, %s491
          %s493 = sshll.u32 %s483, 4
          %s494 = int_to_ptr.vmem [resolvable:$true] %s493
          %499 = dma.vmem_to_hbm [thread:$0]  %s494, 256, %s492, %s480, 128, 128, 8
        $region48: #{tpu_custom_call.1} parent=31 // pred_fallthru
          _
      $region32: #{tpu_custom_call.1} parent=5 // pred_fallthru
        _
      %p500 = scmp.le.s32.totalorder 2, %s19
      // Predicated region
      $region49: #{tpu_custom_call.1} parent=5 // pred_check
        %p501 = pneg %p500
      $region50: #{tpu_custom_call.1} parent=5 // pred_check_branch
        %503 = sbr.rel (%p501) target = $region52
      $region51: #{tpu_custom_call.1} parent=5 // pred_region
        %s504 = ssub.s32 %s19, 2
        // Predicated region
        $region53: #{tpu_custom_call.1} parent=51 // pred_check
          %p505 = pneg %p121
        $region54: #{tpu_custom_call.1} parent=51 // pred_check_branch
          %507 = sbr.rel (%p505) target = $region56
        $region55: #{tpu_custom_call.1} parent=51 // pred_region
          %s508 = sand.u32 %s106, 1
          %s509 = scalar_lea.sflag [#allocation6], %s508
          %s510 = sand.u32 %s106, 1
          %s511 = smul.addr %s510, 16
          %s512 = scalar_lea.vmem [#allocation11], %s511
          %513 = dma.done %s509, 256
        $region56: #{tpu_custom_call.1} parent=51 // pred_fallthru
          _
      $region52: #{tpu_custom_call.1} parent=5 // pred_fallthru
        _
    $region6: #{tpu_custom_call.1} parent=1 // loop_footer
      %s23 = sadd.s32 1, %s19
    $region7: #{tpu_custom_call.1} parent=1 // loop_footer_branch
      %18 = sbr.rel target = $region3
    $region8: #{tpu_custom_call.1} parent=1 // loop_exit
      _
    %514 = vsyncpa [#allocation5], 1
    %s515 = scalar_lea.sflag [#allocation5], 1
    %516 = vsyncpa %s515, 1
    %517 = vsyncpa [#allocation10], 1
    %s518 = scalar_lea.sflag [#allocation10], 1
    %519 = vsyncpa %s518, 1
    %520 = vsyncpa [#allocation6], 1
    %s521 = scalar_lea.sflag [#allocation6], 1
    %522 = vsyncpa %s521, 1
    %523 = vsyncpa [#allocation7], 1
    %s524 = scalar_lea.sflag [#allocation7], 1
    %525 = vsyncpa %s524, 1

</llo_original>
